<compile_context>
chip_gen: v7x
topology: tpu7x:2x2x1
jax: 0.10.0
libtpu: 0.0.40
codegen_flags: <defaults>
</compile_context>

<pallas_src>
import functools

import jax
import jax.numpy as jnp
from jax.experimental import pallas as pl
from jax.experimental.pallas import tpu as pltpu

_LANES = 128      # vreg lane width
_SUBLANES = 8     # f32 vreg sublane count


def linreg_kernel(w_ref, b_ref, x_ref, o_ref):
    # w/b are (1, 1) scalars in SMEM; x/o are lane-dense VMEM tiles.
    # Single fused scale+shift on the VPU; output written exactly once with
    # full unmasked 128-lane stores (the kernel is HBM-bandwidth bound).
    o_ref[...] = x_ref[...] * w_ref[0, 0] + b_ref[0, 0]


def _round_up(n, m):
    return ((n + m - 1) // m) * m


@functools.partial(jax.jit, static_argnames=("tile_rows", "tile_cols"))
def linear_regression(x, w, b, *, tile_rows=512, tile_cols=1024):
    """y = x @ w.T + b for nn.Linear(1, 1).

    x: (N, 1) f32, w: (1, 1) f32, b: (1,) or (1, 1) f32 -> (N, 1) f32.
    """
    N, F = x.shape
    assert F == 1, "LinearRegressionTorch expects a single input feature"
    assert tile_rows % _SUBLANES == 0 and tile_cols % _LANES == 0
    w2 = jnp.asarray(w, dtype=x.dtype).reshape(1, 1)
    b2 = jnp.asarray(b, dtype=x.dtype).reshape(1, 1)

    # Lane-dense working layout: pad the flat vector only up to the next
    # tile_cols-element row (<= 4 KiB), then view it as (rows, tile_cols).
    # If N % tile_cols == 0 both the pad and the final slice are no-ops and
    # XLA elides them.  (Consumers that accept the padded slab directly
    # would avoid the tail-slice pass entirely.)
    padded = _round_up(N, tile_cols)
    x2d = jnp.pad(x.reshape(-1), (0, padded - N)).reshape(-1, tile_cols)
    rows = x2d.shape[0]

    # Block rows: a full tile for large inputs, the whole array for small
    # ones (block_shape equal to the full dim is always legal; otherwise it
    # is a multiple of 8, so Pallas masks the partial last block correctly).
    tr = min(tile_rows, rows)
    grid = (pl.cdiv(rows, tr),)

    out2d = pl.pallas_call(
        linreg_kernel,
        out_shape=jax.ShapeDtypeStruct((rows, tile_cols), x.dtype),
        grid=grid,
        in_specs=[
            pl.BlockSpec(memory_space=pltpu.MemorySpace.SMEM),   # weight
            pl.BlockSpec(memory_space=pltpu.MemorySpace.SMEM),   # bias
            pl.BlockSpec((tr, tile_cols), lambda i: (i, 0)),     # x tile
        ],
        out_specs=pl.BlockSpec((tr, tile_cols), lambda i: (i, 0)),
        compiler_params=pltpu.CompilerParams(
            # Row blocks are fully independent -> "parallel".  (True 2-TC
            # sharding on v7x would use CORE_PARALLEL / core_map; kept
            # portable across v5e/v6e/v7x here.)
            dimension_semantics=("parallel",),
            # 2 MiB tiles double-buffered on in+out = 8 MiB working set;
            # explicit limit leaves headroom for larger tile_rows on v7x.
            vmem_limit_bytes=32 << 20,
        ),
    )(w2, b2, x2d)

    # Back to the module's (N, 1) contract (bitcast + tail slice; the slice
    # is elided when N % tile_cols == 0).
    return out2d.reshape(-1)[:N].reshape(N, 1)


if __name__ == "__main__":
    key = jax.random.PRNGKey(0)
    kx, kw, kb = jax.random.split(key, 3)

    # Deterministic nn.Linear(1, 1)-style parameters: uniform(-1, 1).
    w = jax.random.uniform(kw, (1, 1), dtype=jnp.float32, minval=-1.0, maxval=1.0)
    b = jax.random.uniform(kb, (1, 1), dtype=jnp.float32, minval=-1.0, maxval=1.0)

    # Primary case matches the spec: x = data.x[0:175].view(-1, 1).
    N = 175
    x = jax.random.normal(kx, (N, 1), dtype=jnp.float32)
    out = jax.block_until_ready(linear_regression(x, w, b))
    ref = x @ w.T + b
    assert out.shape == (N, 1) and out.dtype == jnp.float32
    assert jnp.allclose(out, ref, atol=1e-6, rtol=1e-6)

    # Secondary check: exercises the multi-block grid path with a masked
    # partial last block (rows=20, tile_rows=8 -> grid=3, last block 4 rows).
    N2 = 20_000
    x2 = jax.random.normal(kx, (N2, 1), dtype=jnp.float32)
    out2 = jax.block_until_ready(linear_regression(x2, w, b, tile_rows=8))
    ref2 = x2 @ w.T + b
    assert out2.shape == (N2, 1)
    assert jnp.allclose(out2, ref2, atol=1e-6, rtol=1e-6)

    print("KERNEL_OK")
</pallas_src>

<mosaic_0001>
module attributes {stable_mosaic.version = 11 : i64} {
  func.func @linreg_kernel(%arg0: i32, %arg1: memref<1x1xf32, #tpu.memory_space<smem>>, %arg2: memref<1x1xf32, #tpu.memory_space<smem>>, %arg3: memref<1x1024xf32, #tpu.memory_space<vmem>>, %arg4: memref<1x1024xf32, #tpu.memory_space<vmem>>) attributes {dimension_semantics = [#tpu.dimension_semantics<parallel>], iteration_bounds = array<i64: 1>, scalar_prefetch = 0 : i64, scratch_operands = 0 : i64, tpu.core_type = #tpu.core_type<tc>, window_params = [{transform_indices = @transform_0, window_bounds = array<i64: 1, 1>}, {transform_indices = @transform_1, window_bounds = array<i64: 1, 1>}, {transform_indices = @transform_2, window_bounds = array<i64: 1, 1024>}, {transform_indices = @transform_3, window_bounds = array<i64: 1, 1024>}]} {
    %c0 = arith.constant 0 : index
    %c0_0 = arith.constant 0 : index
    %0 = vector.load %arg3[%c0, %c0_0] : memref<1x1024xf32, #tpu.memory_space<vmem>>, vector<1x1024xf32>
    %c0_1 = arith.constant 0 : index
    %c0_2 = arith.constant 0 : index
    %1 = memref.load %arg1[%c0_1, %c0_2] : memref<1x1xf32, #tpu.memory_space<smem>>
    %2 = vector.broadcast %1 : f32 to vector<1x1024xf32>
    %3 = arith.mulf %0, %2 : vector<1x1024xf32>
    %c0_3 = arith.constant 0 : index
    %c0_4 = arith.constant 0 : index
    %4 = memref.load %arg2[%c0_3, %c0_4] : memref<1x1xf32, #tpu.memory_space<smem>>
    %5 = vector.broadcast %4 : f32 to vector<1x1024xf32>
    %6 = arith.addf %3, %5 : vector<1x1024xf32>
    %c0_5 = arith.constant 0 : index
    %c0_6 = arith.constant 0 : index
    %7 = vector.load %arg4[%c0_5, %c0_6] : memref<1x1024xf32, #tpu.memory_space<vmem>>, vector<1x1024xf32>
    tpu.vector_store %arg4[%c0_5, %c0_6], %6 {strides = array<i32>} : memref<1x1024xf32, #tpu.memory_space<vmem>>, vector<1x1024xf32>,
    return
  }
  func.func @transform_0(%arg0: i32) -> (i32, i32) {
    %c0_i32 = arith.constant 0 : i32
    %c0_i32_0 = arith.constant 0 : i32
    %c0_i32_1 = arith.constant 0 : i32
    return %c0_i32, %c0_i32_0 : i32, i32
  }
  func.func @transform_1(%arg0: i32) -> (i32, i32) {
    %c0_i32 = arith.constant 0 : i32
    %c0_i32_0 = arith.constant 0 : i32
    %c0_i32_1 = arith.constant 0 : i32
    return %c0_i32, %c0_i32_0 : i32, i32
  }
  func.func @transform_2(%arg0: i32) -> (i32, i32) {
    %c0_i32 = arith.constant 0 : i32
    %c0_i32_0 = arith.constant 0 : i32
    return %arg0, %c0_i32 : i32, i32
  }
  func.func @transform_3(%arg0: i32) -> (i32, i32) {
    %c0_i32 = arith.constant 0 : i32
    %c0_i32_0 = arith.constant 0 : i32
    return %arg0, %c0_i32 : i32, i32
  }
}

</mosaic_0001>

<llo_original>
// kernel: linear_regression.1
$region0: #{linear_regression.1}
  #allocation0 [shape = 'u32[]', space=smem, size = 0x4, offset = 0x4, fixed_abs, tag = 'smem constant byte address 0x4 - core index']
  #allocation1 [shape = 'u32[144,128]{1,0:T(1,128)}', space=vmem, size = 0x12000, scoped, tag = 'internal scratch']
  #allocation2 [shape = 'f32[1,1]{1,0:T(1,128)S(6)}', space=smem, size = 0x200, scoped, tag = 'scoped memory for linear_regression.1']
  #allocation3 [shape = 'f32[1,1]{1,0:T(1,128)S(6)}', space=smem, size = 0x200, scoped, tag = 'scoped memory for linear_regression.1']
  %s0 = inlined_call_operand.<no memory space> [shape: f32[1,1], index: 0, kind: input, shape index: {}]
  %s1 = inlined_call_operand.<no memory space> [shape: f32[1,1], index: 1, kind: input, shape index: {}]
  %s2 = inlined_call_operand.vmem [shape: f32[1,1024], index: 2, kind: input, shape index: {}]
  %s3 = inlined_call_operand.vmem [shape: f32[1,1024], index: 3, kind: output, shape index: {}]
  %s4 = sld [smem:[#allocation0]]
  $region22: #{linear_regression.1} parent=0
    _
  %s6 = ssub.s32 1, %s4
  %s7 = scalar_select 0, %s6, %s4
  %8 = sst [smem:[#allocation2]] %s0
  %9 = sst [smem:[#allocation3]] %s1
  // Predicated region
  $region2: #{linear_regression.1} parent=0 // pred_check
    _
  $region3: #{linear_regression.1} parent=0 // pred_check_branch
    %11 = sbr.rel (0) target = $region5
  $region4: #{linear_regression.1} parent=0 // pred_region
    _
  $region5: #{linear_regression.1} parent=0 // pred_fallthru
    _
  // Predicated region
  $region6: #{linear_regression.1} parent=0 // pred_check
    _
  $region7: #{linear_regression.1} parent=0 // pred_check_branch
    %13 = sbr.rel (0) target = $region9
  $region8: #{linear_regression.1} parent=0 // pred_region
    _
  $region9: #{linear_regression.1} parent=0 // pred_fallthru
    _
  // Predicated region
  $region10: #{linear_regression.1} parent=0 // pred_check
    _
  $region11: #{linear_regression.1} parent=0 // pred_check_branch
    %15 = sbr.rel (0) target = $region13
  $region12: #{linear_regression.1} parent=0 // pred_region
    _
  $region13: #{linear_regression.1} parent=0 // pred_fallthru
    _
  %v16 = vld [vmem:[%s2] sm:$0xff]
  %s17 = sld [smem:[#allocation2]]
  %v18 = vstv %s17
  %v19 = vmul.f32 %v16, %v18
  %s20 = sld [smem:[#allocation3]]
  %v21 = vstv %s20
  %v22 = vadd.f32 %v19, %v21
  %23 = vst [vmem:[%s3] sm:$0xff] %v22
  // Predicated region
  $region14: #{linear_regression.1} parent=0 // pred_check
    _
  $region15: #{linear_regression.1} parent=0 // pred_check_branch
    %25 = sbr.rel (0) target = $region17
  $region16: #{linear_regression.1} parent=0 // pred_region
    _
  $region17: #{linear_regression.1} parent=0 // pred_fallthru
    _
  // Predicated region
  $region18: #{linear_regression.1} parent=0 // pred_check
    _
  $region19: #{linear_regression.1} parent=0 // pred_check_branch
    %27 = sbr.rel (0) target = $region21
  $region20: #{linear_regression.1} parent=0 // pred_region
    _
  $region21: #{linear_regression.1} parent=0 // pred_fallthru
    _

</llo_original>
